<compile_context>
chip_gen: v7x
topology: tpu7x:2x2x1
jax: 0.10.0
libtpu: 0.0.40
codegen_flags: <defaults>
</compile_context>

<pallas_src>
import functools
import math

import numpy as np
import jax
import jax.numpy as jnp
from jax.experimental import pallas as pl
from jax.experimental.pallas import tpu as pltpu

# ----------------------------- configuration --------------------------------
N, H, W = 2, 16, 16
HQ, WQ = H // 2, W // 2
HW, HWQ = H * W, HQ * WQ
NP, NPQ = N * HW, N * HWQ                     # flattened batch*spatial lanes

IN_CHS, MID_CHS, OUT_CHS = 16, 32, 16
SE_RATIO = 0.25
BN_EPS = 1e-5
PRELU_ALPHA = 0.25                            # torch nn.PReLU() default init

INIT1 = math.ceil(MID_CHS / 2)                # ghost1 primary channels = 16
INIT2 = math.ceil(OUT_CHS / 2)                # ghost2 primary channels = 8


def _make_divisible(v, divisor, min_value=None):
    if min_value is None:
        min_value = divisor
    new_v = max(min_value, int(v + divisor / 2) // divisor * divisor)
    if new_v < 0.9 * v:
        new_v += divisor
    return new_v


RED_C = _make_divisible(MID_CHS * SE_RATIO, 4)          # SE reduced channels = 8

# Depthwise-conv tap orderings (must match weight column packing and masks).
TAPS3 = [(dy, dx) for dy in (-1, 0, 1) for dx in (-1, 0, 1)]      # 3x3
TAPS15 = [(0, dx) for dx in (-2, -1, 0, 1, 2)]                    # 1x5
TAPS51 = [(dy, 0) for dy in (-2, -1, 0, 1, 2)]                    # 5x1


# ------------------------ roll-convention probe -------------------------------
def _probe_roll_is_np_convention():
    """Determine pltpu.roll's rotation direction once with a tiny kernel."""
    def _k(x_ref, o_ref):
        o_ref[...] = pltpu.roll(x_ref[...], shift=1, axis=1)

    x = jnp.arange(128, dtype=jnp.float32).reshape(1, 128)
    y = pl.pallas_call(
        _k,
        out_shape=jax.ShapeDtypeStruct((1, 128), jnp.float32),
        grid=(1,),
        in_specs=[pl.BlockSpec((1, 128), lambda i: (0, 0))],
        out_specs=pl.BlockSpec((1, 128), lambda i: (0, 0)),
    )(x)
    # np.roll convention: y[0] == x[-1] == 127 ; opposite convention: y[0] == 1
    return bool(np.asarray(y)[0, 0] > 64.0)


# ------------------------------ fused kernel ---------------------------------
def _shifted(x, s, np_roll):
    """y[:, i] = x[:, (i + s) mod L]; wrapped positions are masked afterwards."""
    length = x.shape[-1]
    amt = (-s) % length if np_roll else s % length
    return pltpu.roll(x, shift=amt, axis=1)


def _dw_conv(x, taps_w, taps, masks, row_w, np_roll):
    """Depthwise conv on a channel-major, lane-flattened feature map.

    x:      (C, L) activations; L = n_images * rows * row_w (row-major).
    taps_w: (C, n_taps) per-channel tap weights (column k = tap taps[k]).
    taps:   static list of (dy, dx) offsets.
    masks:  (n_taps, L) 0/1 host-precomputed validity masks (zero wherever the
            shifted source would cross a row / image / array boundary).
    """
    acc = None
    for k, (dy, dx) in enumerate(taps):
        s = dy * row_w + dx
        v = x if s == 0 else _shifted(x, s, np_roll) * masks[k:k + 1, :]
        term = v * taps_w[:, k:k + 1]
        acc = term if acc is None else acc + term
    return acc


def _ghost_bottleneck_kernel(
        x_ref, pmat_ref, umat_ref, seg_ref, segt_ref, mask3_ref, maskq_ref,
        bias_ref, g1pw_ref, g1cw_ref, spw_ref, sd15w_ref, sd51w_ref,
        sew1_ref, sew2_ref, g2pw_ref, g2cw_ref,
        o_ref, *, alpha, np_roll):
    def mm(a, b):
        return jnp.dot(a, b, preferred_element_type=jnp.float32)

    def prelu(v):
        return jnp.where(v >= 0.0, v, alpha * v)

    x = x_ref[...]                              # (16, 512)  channel-major
    b = bias_ref[...]                           # (32, 9)    packed biases
    mask3 = mask3_ref[...]                      # (9, 512)
    maskq = maskq_ref[...]                      # (10, 128)

    # ---- ghost1 'attn' short branch (DFC attention) at half resolution ----
    pooled = mm(x, pmat_ref[...])                               # 2x2 avg-pool
    res = mm(spw_ref[...], pooled) + b[0:MID_CHS, 2:3]          # 1x1 conv + BN
    res = _dw_conv(res, sd15w_ref[...], TAPS15, maskq[0:5, :], WQ, np_roll) \
        + b[0:MID_CHS, 3:4]                                     # 1x5 dw + BN
    res = _dw_conv(res, sd51w_ref[...], TAPS51, maskq[5:10, :], WQ, np_roll) \
        + b[0:MID_CHS, 4:5]                                     # 5x1 dw + BN
    gate = mm(jax.nn.sigmoid(res), umat_ref[...])               # nearest 2x up

    # ---- ghost1 primary (1x1) + cheap (3x3 dw), folded BN + PReLU ----
    x1 = prelu(mm(g1pw_ref[...], x) + b[0:INIT1, 0:1])          # (16, 512)
    x2 = prelu(_dw_conv(x1, g1cw_ref[...], TAPS3, mask3, W, np_roll)
               + b[0:INIT1, 1:2])                               # (16, 512)

    xa = x1 * gate[0:INIT1, :]                  # DFC gating, halves kept split
    xb = x2 * gate[INIT1:MID_CHS, :]

    # ---- SqueezeExcite (per-image means / broadcasts as tiny MXU matmuls) ----
    seg = seg_ref[...]                          # (512, 2): 1/HW per-image cols
    segt = segt_ref[...]                        # (2, 512): per-image ones rows
    ma = mm(xa, seg)                            # (16, 2) per-image channel means
    mb = mm(xb, seg)
    w1 = sew1_ref[...]                          # (8, 32)
    hs = prelu(mm(w1[:, 0:INIT1], ma) + mm(w1[:, INIT1:MID_CHS], mb)
               + b[0:RED_C, 5:6])               # (8, 2)
    gse = mm(sew2_ref[...], hs) + b[0:MID_CHS, 6:7]             # (32, 2)
    gse = jnp.clip(gse + 3.0, 0.0, 6.0) * (1.0 / 6.0)           # hard_sigmoid
    xa = xa * mm(gse[0:INIT1, :], segt)
    xb = xb * mm(gse[INIT1:MID_CHS, :], segt)

    # ---- ghost2 'original' (no activation) ----
    w2 = g2pw_ref[...]                          # (8, 32)
    y1 = mm(w2[:, 0:INIT1], xa) + mm(w2[:, INIT1:MID_CHS], xb) \
        + b[0:INIT2, 7:8]                       # (8, 512)
    y2 = _dw_conv(y1, g2cw_ref[...], TAPS3, mask3, W, np_roll) \
        + b[0:INIT2, 8:9]                       # (8, 512)

    # ---- assemble + identity shortcut: two aligned, full-lane stores ----
    o_ref[0:INIT2, :] = y1 + x[0:INIT2, :]
    o_ref[INIT2:OUT_CHS, :] = y2 + x[INIT2:OUT_CHS, :]


# ------------------------------- wrapper --------------------------------------
def _layout_constants():
    """Constant operators for the channel-major, batch-folded lane layout."""
    pmat_t = np.zeros((NP, NPQ), np.float32)     # 2x2 avg-pool   (block-diag)
    umat_t = np.zeros((NPQ, NP), np.float32)     # nearest 2x up  (block-diag)
    seg = np.zeros((NP, N), np.float32)          # per-image mean operator
    segt = np.zeros((N, NP), np.float32)         # per-image broadcast operator
    for n in range(N):
        for h in range(H):
            for w in range(W):
                g = n * HW + h * W + w
                q = n * HWQ + (h // 2) * WQ + (w // 2)
                pmat_t[g, q] = 0.25
                umat_t[q, g] = 1.0
                seg[g, n] = 1.0 / HW
                segt[n, g] = 1.0

    def tap_masks(taps, hh, ww, hwq):
        m = np.zeros((len(taps), N * hwq), np.float32)
        for k, (dy, dx) in enumerate(taps):
            for n in range(N):
                for h in range(hh):
                    for w in range(ww):
                        if 0 <= h + dy < hh and 0 <= w + dx < ww:
                            m[k, n * hwq + h * ww + w] = 1.0
        return m

    mask3 = tap_masks(TAPS3, H, W, HW)                                  # (9, 512)
    maskq = np.concatenate([tap_masks(TAPS15, HQ, WQ, HWQ),
                            tap_masks(TAPS51, HQ, WQ, HWQ)], axis=0)    # (10, 128)
    return [jnp.asarray(a) for a in (pmat_t, umat_t, seg, segt, mask3, maskq)]


def ghost_bottleneck_v2(x_nchw, operands, *, np_roll):
    n, c, h, w = x_nchw.shape
    # NCHW -> channel-major (C, N*H*W): tiny layout plumbing outside the kernel.
    x_cm = x_nchw.reshape(n, c, h * w).transpose(1, 0, 2).reshape(c, n * h * w)
    args = [x_cm] + list(operands)

    def _spec(a):
        return pl.BlockSpec(a.shape, lambda i: (0, 0))     # all operands are 2D

    kern = functools.partial(_ghost_bottleneck_kernel,
                             alpha=PRELU_ALPHA, np_roll=np_roll)
    y_cm = pl.pallas_call(
        kern,
        out_shape=jax.ShapeDtypeStruct((OUT_CHS, NP), jnp.float32),
        grid=(1,),
        in_specs=[_spec(a) for a in args],
        out_specs=pl.BlockSpec((OUT_CHS, NP), lambda i: (0, 0)),
    )(*args)
    return (y_cm.reshape(OUT_CHS, n, h * w)
                .transpose(1, 0, 2)
                .reshape(n, OUT_CHS, h, w))


# ------------------------------ parameters -----------------------------------
def init_params(key):
    ks = iter(jax.random.split(key, 64))

    def conv_w(shape, fan_in):
        return jax.random.normal(next(ks), shape, jnp.float32) / math.sqrt(fan_in)

    def bn(c):
        gamma = jax.random.uniform(next(ks), (c,), jnp.float32, 0.5, 1.5)
        beta = 0.1 * jax.random.normal(next(ks), (c,), jnp.float32)
        mean = 0.1 * jax.random.normal(next(ks), (c,), jnp.float32)
        var = jax.random.uniform(next(ks), (c,), jnp.float32, 0.5, 1.5)
        scale = gamma / jnp.sqrt(var + BN_EPS)
        return scale, beta - mean * scale

    p = {}
    # Weights already in channel-major orientation: (Cout, Cin) / (C, n_taps).
    p["g1_prim_w"], p["g1_prim_bn"] = conv_w((INIT1, IN_CHS), IN_CHS), bn(INIT1)
    p["g1_cheap_w"], p["g1_cheap_bn"] = conv_w((INIT1, 9), 9), bn(INIT1)
    p["short_pw_w"], p["short_bn1"] = conv_w((MID_CHS, IN_CHS), IN_CHS), bn(MID_CHS)
    p["short_dw15_w"], p["short_bn2"] = conv_w((MID_CHS, 5), 5), bn(MID_CHS)
    p["short_dw51_w"], p["short_bn3"] = conv_w((MID_CHS, 5), 5), bn(MID_CHS)
    p["se_w1"] = conv_w((RED_C, MID_CHS), MID_CHS)
    p["se_b1"] = 0.1 * jax.random.normal(next(ks), (RED_C,), jnp.float32)
    p["se_w2"] = conv_w((MID_CHS, RED_C), RED_C)
    p["se_b2"] = 0.1 * jax.random.normal(next(ks), (MID_CHS,), jnp.float32)
    p["g2_prim_w"], p["g2_prim_bn"] = conv_w((INIT2, MID_CHS), MID_CHS), bn(INIT2)
    p["g2_cheap_w"], p["g2_cheap_bn"] = conv_w((INIT2, 9), 9), bn(INIT2)
    return p


def pack_operands(p):
    """Fold inference BatchNorm into conv weights; pack biases into one array."""
    def fold(wm, bn_sb):                       # row-scale (per out channel)
        s, shift = bn_sb
        return wm * s[:, None], shift

    g1pw, g1pb = fold(p["g1_prim_w"], p["g1_prim_bn"])
    g1cw, g1cb = fold(p["g1_cheap_w"], p["g1_cheap_bn"])
    spw, spb = fold(p["short_pw_w"], p["short_bn1"])
    sd15w, sd15b = fold(p["short_dw15_w"], p["short_bn2"])
    sd51w, sd51b = fold(p["short_dw51_w"], p["short_bn3"])
    g2pw, g2pb = fold(p["g2_prim_w"], p["g2_prim_bn"])
    g2cw, g2cb = fold(p["g2_cheap_w"], p["g2_cheap_bn"])

    bias = jnp.zeros((MID_CHS, 9), jnp.float32)
    for col, vec in enumerate([g1pb, g1cb, spb, sd15b, sd51b,
                               p["se_b1"], p["se_b2"], g2pb, g2cb]):
        bias = bias.at[:vec.shape[0], col].set(vec)

    return [bias, g1pw, g1cw, spw, sd15w, sd51w,
            p["se_w1"], p["se_w2"], g2pw, g2cw]


# --------------------------------- main ---------------------------------------
if __name__ == "__main__":
    np_roll = _probe_roll_is_np_convention()

    key_x, key_w = jax.random.split(jax.random.PRNGKey(0))
    x_nchw = jax.random.normal(key_x, (N, IN_CHS, H, W), jnp.float32)
    operands = _layout_constants() + pack_operands(init_params(key_w))

    fwd = jax.jit(functools.partial(ghost_bottleneck_v2, np_roll=np_roll))
    y_nchw = fwd(x_nchw, operands)
    jax.block_until_ready(y_nchw)

    assert y_nchw.shape == (N, OUT_CHS, H, W), y_nchw.shape
    assert bool(jnp.all(jnp.isfinite(y_nchw)))
    print("KERNEL_OK")
</pallas_src>

<mosaic_0001>
module attributes {stable_mosaic.version = 11 : i64} {
  func.func @_k(%arg0: i32, %arg1: memref<1x128xf32, #tpu.memory_space<vmem>>, %arg2: memref<1x128xf32, #tpu.memory_space<vmem>>) attributes {dimension_semantics = [#tpu.dimension_semantics<arbitrary>], iteration_bounds = array<i64: 1>, scalar_prefetch = 0 : i64, scratch_operands = 0 : i64, tpu.core_type = #tpu.core_type<tc>, window_params = [{pipeline_mode = #tpu.pipeline_mode<synchronous>, transform_indices = @transform_0, window_bounds = array<i64: 1, 128>}, {pipeline_mode = #tpu.pipeline_mode<synchronous>, transform_indices = @transform_1, window_bounds = array<i64: 1, 128>}]} {
    %c0 = arith.constant 0 : index
    %c0_0 = arith.constant 0 : index
    %0 = vector.load %arg1[%c0, %c0_0] : memref<1x128xf32, #tpu.memory_space<vmem>>, vector<1x128xf32>
    %c1_i32 = arith.constant 1 : i32
    %1 = tpu.dynamic_rotate %0 by %c1_i32 dim 1 : vector<1x128xf32>, i32 -> vector<1x128xf32>
    %c0_1 = arith.constant 0 : index
    %c0_2 = arith.constant 0 : index
    %2 = vector.load %arg2[%c0_1, %c0_2] : memref<1x128xf32, #tpu.memory_space<vmem>>, vector<1x128xf32>
    tpu.vector_store %arg2[%c0_1, %c0_2], %1 {strides = array<i32>} : memref<1x128xf32, #tpu.memory_space<vmem>>, vector<1x128xf32>,
    return
  }
  func.func @transform_0(%arg0: i32) -> (i32, i32) {
    %c0_i32 = arith.constant 0 : i32
    %c0_i32_0 = arith.constant 0 : i32
    %c0_i32_1 = arith.constant 0 : i32
    return %c0_i32, %c0_i32_0 : i32, i32
  }
  func.func @transform_1(%arg0: i32) -> (i32, i32) {
    %c0_i32 = arith.constant 0 : i32
    %c0_i32_0 = arith.constant 0 : i32
    %c0_i32_1 = arith.constant 0 : i32
    return %c0_i32, %c0_i32_0 : i32, i32
  }
}

</mosaic_0001>

<llo_original>
// kernel: tpu_custom_call.1
$region0: #{tpu_custom_call.1}
  #allocation0 [shape = 'u32[]', space=smem, size = 0x4, offset = 0x4, fixed_abs, tag = 'smem constant byte address 0x4 - core index']
  #allocation1 [shape = 'u32[144,128]{1,0:T(1,128)}', space=vmem, size = 0x12000, scoped, tag = 'internal scratch']
  %s0 = inlined_call_operand.hbm [shape: f32[1,128], index: 0, kind: input, shape index: {}]
  %s1 = inlined_call_operand.hbm [shape: f32[1,128], index: 1, kind: output, shape index: {}]
  %s2 = sld [smem:[#allocation0]]
  $region18: #{tpu_custom_call.1} parent=0
    _
  %s4 = ssub.s32 1, %s2
  %s5 = scalar_select 0, %s4, %s2
  $region1: #{tpu_custom_call.1} parent=0
    #allocation2 [shape = 'u8[512]{0}', space=vmem, size = 0x400, scoped, tag = 'input window, operand 0, single buffered']
    #allocation3 [shape = 's32[1]{0}', space=sflag, size = 0x4, scoped, tag = 'scoped memory for tpu_custom_call.1']
    #allocation4 [shape = 's32[1]{0}', space=sflag, size = 0x4, scoped, tag = 'scoped memory for tpu_custom_call.1']
    #allocation5 [shape = 'u8[512]{0}', space=vmem, size = 0x400, scoped, tag = 'output window, operand 0, single buffered']
    %6 = vsyncpa [#allocation3], 0
    %7 = vsyncpa [#allocation4], 0
    // Predicated region
    $region2: #{tpu_custom_call.1} parent=1 // pred_check
      _
    $region3: #{tpu_custom_call.1} parent=1 // pred_check_branch
      %9 = sbr.rel (0) target = $region5
    $region4: #{tpu_custom_call.1} parent=1 // pred_region
      %s11 = ssub.s32 16, 16
      %12 = vsyncadd [#allocation3], %s11
      %s14 = sshll.u32 [#allocation2], 4
      %s15 = int_to_ptr.vmem [resolvable:$true] %s14
      %17 = dma.hbm_to_vmem [thread:$0]  %s0, 16, %s15, [#allocation3]
    $region5: #{tpu_custom_call.1} parent=1 // pred_fallthru
      _
    // Predicated region
    $region6: #{tpu_custom_call.1} parent=1 // pred_check
      _
    $region7: #{tpu_custom_call.1} parent=1 // pred_check_branch
      %19 = sbr.rel (0) target = $region9
    $region8: #{tpu_custom_call.1} parent=1 // pred_region
      %20 = dma.done [#allocation3], 16
    $region9: #{tpu_custom_call.1} parent=1 // pred_fallthru
      _
    %v21 = vld [vmem:[#allocation2] sm:$0x1]
    %22 = vrot.lane.b32.xlu0 %v21, 1
    %v23 = vpop.permute.xlu0 %22
    %24 = vst [vmem:[#allocation5] sm:$0x1] %v23
    // Predicated region
    $region10: #{tpu_custom_call.1} parent=1 // pred_check
      _
    $region11: #{tpu_custom_call.1} parent=1 // pred_check_branch
      %26 = sbr.rel (0) target = $region13
    $region12: #{tpu_custom_call.1} parent=1 // pred_region
      %s28 = ssub.s32 16, 16
      %29 = vsyncadd [#allocation4], %s28
      %s31 = sshll.u32 [#allocation5], 4
      %s32 = int_to_ptr.vmem [resolvable:$true] %s31
      %34 = dma.vmem_to_hbm [thread:$0]  %s32, 16, %s1, [#allocation4]
    $region13: #{tpu_custom_call.1} parent=1 // pred_fallthru
      _
    // Predicated region
    $region14: #{tpu_custom_call.1} parent=1 // pred_check
      _
    $region15: #{tpu_custom_call.1} parent=1 // pred_check_branch
      %36 = sbr.rel (0) target = $region17
    $region16: #{tpu_custom_call.1} parent=1 // pred_region
      %37 = dma.done [#allocation4], 16
    $region17: #{tpu_custom_call.1} parent=1 // pred_fallthru
      _
    %38 = vsyncpa [#allocation3], 1
    %39 = vsyncpa [#allocation4], 1

</llo_original>
